<compile_context>
chip_gen: v7x
topology: tpu7x:2x2x1
jax: 0.10.0
libtpu: 0.0.40
codegen_flags: <defaults>
</compile_context>

<pallas_src>
import jax
import jax.numpy as jnp
from jax.experimental import pallas as pl
from jax.experimental.pallas import tpu as pltpu


def _film_kernel(x_ref, w_ref, freq_ref, fb_ref, o_ref):
    # x_ref:    (TM, D_in)   sequence tile of one batch element
    # w_ref:    (D_in, Hp)   resident weight
    # freq_ref: (B, Hp)      resident per-batch FiLM frequency table
    # fb_ref:   (B, Hp)      resident (freq * bias + phase) table
    # o_ref:    (TM, Hp)
    bi = pl.program_id(0)
    h = jnp.dot(x_ref[...], w_ref[...], preferred_element_type=jnp.float32)
    f = freq_ref[pl.ds(bi, 1), :]     # (1, Hp), broadcast over rows
    c = fb_ref[pl.ds(bi, 1), :]       # (1, Hp)
    o_ref[...] = jnp.sin(f * h + c).astype(o_ref.dtype)


def _film_ignore_kernel(x_ref, w_ref, freq_ref, fb_ref, dfreq_ref, dfb_ref,
                        mask_ref, o_ref):
    # freq_ref/fb_ref: conditioned tables (B, Hp)
    # dfreq_ref/dfb_ref: (ignore_row - cond_row) deltas (B, Hp)
    # mask_ref: (TM, 1) float {0,1} over the sequence rows of this block.
    bi = pl.program_id(0)
    h = jnp.dot(x_ref[...], w_ref[...], preferred_element_type=jnp.float32)
    m = mask_ref[...]                                       # (TM, 1)
    f = freq_ref[pl.ds(bi, 1), :] + m * dfreq_ref[pl.ds(bi, 1), :]
    c = fb_ref[pl.ds(bi, 1), :] + m * dfb_ref[pl.ds(bi, 1), :]
    o_ref[...] = jnp.sin(f * h + c).astype(o_ref.dtype)


def film_layer(x, w, b, freq, phase_shift, ignore_conditions=None, *,
               matmul_dtype=None, out_dtype=None, tm_target=512):
    """Pallas FiLM layer.

    x:           [B, N, D_in]
    w:           [D_in, H]   (transpose of torch Linear weight)
    b:           [H]
    freq:        [B, H]  (or [B+1, H] when ignore_conditions is given)
    phase_shift: same shape as freq
    ignore_conditions: optional int array of sequence positions that use
                       freq[-1] / phase_shift[-1].
    matmul_dtype: optional dtype for the matmul operands (e.g. jnp.bfloat16
                  on v6e/v7x); accumulation and FiLM affine stay f32.
    out_dtype:    optional output dtype (e.g. jnp.bfloat16); defaults to x.dtype.
    """
    B, N, D_in = x.shape
    D_w, H = w.shape
    assert D_w == D_in
    f32 = jnp.float32
    out_dtype = x.dtype if out_dtype is None else out_dtype

    # ---- matmul operand dtype (bf16 recommended on v6e/v7x) ----------------
    if matmul_dtype is not None:
        x_mm = x.astype(matmul_dtype)
        w_mm = w.astype(matmul_dtype)
    else:
        x_mm, w_mm = x, w

    # ---- FiLM-dim padding: only when H < 128 (lane density) ----------------
    Hp = 128 if H < 128 else H
    pad_h = Hp - H
    w_p = jnp.pad(w_mm, ((0, 0), (0, pad_h))) if pad_h else w_mm
    b32 = b.astype(f32)
    b_p = jnp.pad(b32, ((0, pad_h),)) if pad_h else b32
    freq32 = freq.astype(f32)
    phase32 = phase_shift.astype(f32)
    if pad_h:
        freq32 = jnp.pad(freq32, ((0, 0), (0, pad_h)))
        phase32 = jnp.pad(phase32, ((0, 0), (0, pad_h)))
    # Fold the Linear bias into the FiLM affine (one tiny table).
    fb = freq32 * b_p[None, :] + phase32

    # ---- tile-size / VMEM budgeting -----------------------------------------
    x_item = jnp.dtype(x_mm.dtype).itemsize
    w_item = jnp.dtype(w_mm.dtype).itemsize
    o_item = jnp.dtype(out_dtype).itemsize
    row_align = 16 if x_item < 4 else 8
    n_tables = 2 if ignore_conditions is None else 4
    rows = B

    resident = 2 * D_in * Hp * w_item + 2 * n_tables * rows * Hp * 4
    per_row = 2 * (D_in * x_item + Hp * o_item)       # double-buffered x + out
    budget = 44 << 20                                  # safe under v7x 64 MiB
    avail = budget - resident
    if avail > per_row * row_align:
        tm_cap = max(row_align, (avail // per_row) // row_align * row_align)
    else:
        tm_cap = row_align
    tm_target = max(row_align, (tm_target // row_align) * row_align)
    TM = int(max(row_align, min(tm_target, tm_cap)))
    if N <= TM:
        TM = N                                         # single full block
    grid = (B, pl.cdiv(N, TM))

    mask_bytes = 2 * TM * 128 * 4 if ignore_conditions is not None else 0
    vmem_est = resident + TM * per_row + mask_bytes
    vmem_limit = int(min(max(vmem_est + (16 << 20), 32 << 20), 128 << 20))

    compiler_params = pltpu.CompilerParams(
        dimension_semantics=("parallel", "parallel"),
        vmem_limit_bytes=vmem_limit)

    cost = pl.CostEstimate(
        flops=int(2 * B * N * D_in * H + 3 * B * N * H),
        transcendentals=int(B * N * H),
        bytes_accessed=int(x_mm.size * x_item + D_in * Hp * w_item
                           + n_tables * rows * Hp * 4 + B * N * Hp * o_item),
    )

    x_spec = pl.BlockSpec((pl.Squeezed(), TM, D_in), lambda bi, ni: (bi, ni, 0))
    w_spec = pl.BlockSpec((D_in, Hp), lambda bi, ni: (0, 0))
    tbl_spec = pl.BlockSpec((rows, Hp), lambda bi, ni: (0, 0))
    out_spec = pl.BlockSpec((pl.Squeezed(), TM, Hp), lambda bi, ni: (bi, ni, 0))
    out_shape = jax.ShapeDtypeStruct((B, N, Hp), out_dtype)

    if ignore_conditions is None:
        assert freq32.shape[0] == B, "freq must have B rows"
        out = pl.pallas_call(
            _film_kernel,
            out_shape=out_shape,
            grid_spec=pltpu.PrefetchScalarGridSpec(
                num_scalar_prefetch=0,
                grid=grid,
                in_specs=[x_spec, w_spec, tbl_spec, tbl_spec],
                out_specs=out_spec),
            compiler_params=compiler_params,
            cost_estimate=cost,
        )(x_mm, w_p, freq32, fb)
    else:
        assert freq32.shape[0] == B + 1, "freq must have B+1 rows"
        freq_c, fb_c = freq32[:B], fb[:B]
        dfreq = freq32[B:B + 1] - freq_c               # (B, Hp)
        dfb = fb[B:B + 1] - fb_c
        # {0,1} mask over the sequence (scatter: duplicates fine, OOB dropped).
        mask = jnp.zeros((N,), f32).at[ignore_conditions].set(1.0).reshape(N, 1)
        mask_spec = pl.BlockSpec((TM, 1), lambda bi, ni: (ni, 0))
        out = pl.pallas_call(
            _film_ignore_kernel,
            out_shape=out_shape,
            grid_spec=pltpu.PrefetchScalarGridSpec(
                num_scalar_prefetch=0,
                grid=grid,
                in_specs=[x_spec, w_spec, tbl_spec, tbl_spec, tbl_spec,
                          tbl_spec, mask_spec],
                out_specs=out_spec),
            compiler_params=compiler_params,
            cost_estimate=cost,
        )(x_mm, w_p, freq_c, fb_c, dfreq, dfb, mask)

    if pad_h:
        out = out[..., :H]
    return out


def _reference(x, w, b, freq, phase_shift, ignore_conditions=None):
    h = jnp.einsum("bnd,dh->bnh", x, w) + b
    _, N, _ = h.shape
    if ignore_conditions is not None:
        cond_f, cond_p = freq[:-1], phase_shift[:-1]
        ign_f, ign_p = freq[-1], phase_shift[-1]
        mask = jnp.zeros((N,), dtype=bool).at[ignore_conditions].set(True)
        f = jnp.where(mask[None, :, None], ign_f[None, None, :],
                      cond_f[:, None, :])
        p = jnp.where(mask[None, :, None], ign_p[None, None, :],
                      cond_p[:, None, :])
    else:
        f, p = freq[:, None, :], phase_shift[:, None, :]
    return jnp.sin(f * h + p)


if __name__ == "__main__":
    key = jax.random.PRNGKey(0)
    f32 = jnp.float32

    # ---- small shapes consistent with the module ---------------------------
    B, N, D_in, H = 2, 8, 32, 32
    k_x, k_w, k_b, k_f, k_p = jax.random.split(key, 5)
    x = jax.random.normal(k_x, (B, N, D_in), dtype=f32)
    bound = 1.0 / jnp.sqrt(jnp.float32(D_in))
    w = jax.random.uniform(k_w, (D_in, H), minval=-bound, maxval=bound, dtype=f32)
    b = jax.random.uniform(k_b, (H,), minval=-bound, maxval=bound, dtype=f32)
    freq = jax.random.normal(k_f, (B, H), dtype=f32) * 10.0 + 30.0
    phase = jax.random.normal(k_p, (B, H), dtype=f32)

    out = jax.block_until_ready(film_layer(x, w, b, freq, phase))
    ref = _reference(x, w, b, freq, phase)
    assert out.shape == (B, N, H)
    assert jnp.allclose(out, ref, atol=1e-4, rtol=1e-4), "standard path mismatch"

    # ---- ignore_conditions path (freq/phase have B+1 rows) ------------------
    freq_ic = jax.random.normal(jax.random.PRNGKey(1), (B + 1, H), dtype=f32)
    phase_ic = jax.random.normal(jax.random.PRNGKey(2), (B + 1, H), dtype=f32)
    ignore_idx = jnp.array([1, 3], dtype=jnp.int32)
    out2 = jax.block_until_ready(
        film_layer(x, w, b, freq_ic, phase_ic, ignore_conditions=ignore_idx))
    ref2 = _reference(x, w, b, freq_ic, phase_ic, ignore_conditions=ignore_idx)
    assert out2.shape == (B, N, H)
    assert jnp.allclose(out2, ref2, atol=1e-4, rtol=1e-4), "ignore path mismatch"

    # ---- multi-tile ragged-N, unpadded D_in and H >= 128 coverage -----------
    B2, N2, D2, H2 = 2, 300, 40, 160
    k_x2, k_w2, k_b2, k_f2, k_p2 = jax.random.split(jax.random.PRNGKey(3), 5)
    x2 = jax.random.normal(k_x2, (B2, N2, D2), dtype=f32)
    bound2 = 1.0 / jnp.sqrt(jnp.float32(D2))
    w2 = jax.random.uniform(k_w2, (D2, H2), minval=-bound2, maxval=bound2, dtype=f32)
    b2 = jax.random.uniform(k_b2, (H2,), minval=-bound2, maxval=bound2, dtype=f32)
    freq2 = jax.random.normal(k_f2, (B2 + 1, H2), dtype=f32)
    phase2 = jax.random.normal(k_p2, (B2 + 1, H2), dtype=f32)
    ign2 = jnp.array([0, 7, 13, 299], dtype=jnp.int32)

    out3 = jax.block_until_ready(
        film_layer(x2, w2, b2, freq2[:B2], phase2[:B2], tm_target=128))
    ref3 = _reference(x2, w2, b2, freq2[:B2], phase2[:B2])
    assert out3.shape == (B2, N2, H2)
    assert jnp.allclose(out3, ref3, atol=2e-4, rtol=1e-4), "ragged standard mismatch"

    out4 = jax.block_until_ready(
        film_layer(x2, w2, b2, freq2, phase2, ignore_conditions=ign2,
                   tm_target=128))
    ref4 = _reference(x2, w2, b2, freq2, phase2, ignore_conditions=ign2)
    assert jnp.allclose(out4, ref4, atol=2e-4, rtol=1e-4), "ragged ignore mismatch"

    # ---- bf16 matmul operands + bf16 output (v6e/v7x recommendation) --------
    out5 = jax.block_until_ready(
        film_layer(x2, w2, b2, freq2[:B2], phase2[:B2], tm_target=128,
                   matmul_dtype=jnp.bfloat16, out_dtype=jnp.bfloat16))
    ref5 = _reference(x2.astype(jnp.bfloat16).astype(f32),
                      w2.astype(jnp.bfloat16).astype(f32),
                      b2, freq2[:B2], phase2[:B2])
    assert out5.dtype == jnp.bfloat16
    assert jnp.allclose(out5.astype(f32), ref5, atol=2e-2, rtol=2e-2), \
        "bf16 path mismatch"

    print("KERNEL_OK")
</pallas_src>

<mosaic_0001>
module attributes {stable_mosaic.version = 11 : i64} {
  func.func @_film_kernel(%arg0: i32, %arg1: i32, %arg2: memref<1x8x32xf32, #tpu.memory_space<vmem>>, %arg3: memref<32x128xf32, #tpu.memory_space<vmem>>, %arg4: memref<2x128xf32, #tpu.memory_space<vmem>>, %arg5: memref<2x128xf32, #tpu.memory_space<vmem>>, %arg6: memref<1x8x128xf32, #tpu.memory_space<vmem>>) attributes {dimension_semantics = [#tpu.dimension_semantics<parallel>, #tpu.dimension_semantics<parallel>], iteration_bounds = array<i64: 2, 1>, scalar_prefetch = 0 : i64, scratch_operands = 0 : i64, tpu.core_type = #tpu.core_type<tc>, window_params = [{transform_indices = @transform_0, window_bounds = array<i64: 1, 8, 32>}, {pipeline_mode = #tpu.pipeline_mode<synchronous>, transform_indices = @transform_1, window_bounds = array<i64: 32, 128>}, {pipeline_mode = #tpu.pipeline_mode<synchronous>, transform_indices = @transform_2, window_bounds = array<i64: 2, 128>}, {pipeline_mode = #tpu.pipeline_mode<synchronous>, transform_indices = @transform_3, window_bounds = array<i64: 2, 128>}, {transform_indices = @transform_4, window_bounds = array<i64: 1, 8, 128>}]} {
    %c0 = arith.constant 0 : index
    %c0_0 = arith.constant 0 : index
    %c0_1 = arith.constant 0 : index
    %0 = vector.load %arg2[%c0, %c0_0, %c0_1] : memref<1x8x32xf32, #tpu.memory_space<vmem>>, vector<1x8x32xf32>
    %1 = vector.shape_cast %0 : vector<1x8x32xf32> to vector<8x32xf32>
    %c0_2 = arith.constant 0 : index
    %c0_3 = arith.constant 0 : index
    %2 = vector.load %arg3[%c0_2, %c0_3] : memref<32x128xf32, #tpu.memory_space<vmem>>, vector<32x128xf32>
    %cst = arith.constant dense<0.000000e+00> : vector<8x128xf32>
    %3 = tpu.matmul %1, %2, %cst {dimension_numbers = #tpu.dot_dimension_numbers<[1], [0], [0], [1], [0, 0, 1, 1], [], []>} : vector<8x32xf32>, vector<32x128xf32>, vector<8x128xf32> -> vector<8x128xf32>
    %4 = arith.index_cast %arg0 : i32 to index
    %c0_4 = arith.constant 0 : index
    %5 = vector.load %arg4[%4, %c0_4] : memref<2x128xf32, #tpu.memory_space<vmem>>, vector<1x128xf32>
    %6 = arith.index_cast %arg0 : i32 to index
    %c0_5 = arith.constant 0 : index
    %7 = vector.load %arg5[%6, %c0_5] : memref<2x128xf32, #tpu.memory_space<vmem>>, vector<1x128xf32>
    %8 = vector.broadcast %5 : vector<1x128xf32> to vector<8x128xf32>
    %9 = arith.mulf %8, %3 : vector<8x128xf32>
    %10 = vector.broadcast %7 : vector<1x128xf32> to vector<8x128xf32>
    %11 = arith.addf %9, %10 : vector<8x128xf32>
    %12 = math.sin %11 : vector<8x128xf32>
    %c0_6 = arith.constant 0 : index
    %c0_7 = arith.constant 0 : index
    %c0_8 = arith.constant 0 : index
    %13 = vector.load %arg6[%c0_6, %c0_7, %c0_8] : memref<1x8x128xf32, #tpu.memory_space<vmem>>, vector<1x8x128xf32>
    %14 = vector.shape_cast %13 : vector<1x8x128xf32> to vector<8x128xf32>
    %15 = vector.shape_cast %12 : vector<8x128xf32> to vector<1x8x128xf32>
    tpu.vector_store %arg6[%c0_6, %c0_7, %c0_8], %15 {strides = array<i32>} : memref<1x8x128xf32, #tpu.memory_space<vmem>>, vector<1x8x128xf32>,
    return
  }
  func.func @transform_0(%arg0: i32, %arg1: i32) -> (i32, i32, i32) {
    %c0_i32 = arith.constant 0 : i32
    %c0_i32_0 = arith.constant 0 : i32
    return %arg0, %arg1, %c0_i32 : i32, i32, i32
  }
  func.func @transform_1(%arg0: i32, %arg1: i32) -> (i32, i32) {
    %c0_i32 = arith.constant 0 : i32
    %c0_i32_0 = arith.constant 0 : i32
    %c0_i32_1 = arith.constant 0 : i32
    return %c0_i32, %c0_i32_0 : i32, i32
  }
  func.func @transform_2(%arg0: i32, %arg1: i32) -> (i32, i32) {
    %c0_i32 = arith.constant 0 : i32
    %c0_i32_0 = arith.constant 0 : i32
    %c0_i32_1 = arith.constant 0 : i32
    return %c0_i32, %c0_i32_0 : i32, i32
  }
  func.func @transform_3(%arg0: i32, %arg1: i32) -> (i32, i32) {
    %c0_i32 = arith.constant 0 : i32
    %c0_i32_0 = arith.constant 0 : i32
    %c0_i32_1 = arith.constant 0 : i32
    return %c0_i32, %c0_i32_0 : i32, i32
  }
  func.func @transform_4(%arg0: i32, %arg1: i32) -> (i32, i32, i32) {
    %c0_i32 = arith.constant 0 : i32
    %c0_i32_0 = arith.constant 0 : i32
    return %arg0, %arg1, %c0_i32 : i32, i32, i32
  }
}

</mosaic_0001>

<llo_original>
// kernel: tpu_custom_call.1
$region0: #{tpu_custom_call.1}
  #allocation0 [shape = 'u32[]', space=smem, size = 0x4, offset = 0x4, fixed_abs, tag = 'smem constant byte address 0x4 - core index']
  #allocation1 [shape = 'u32[144,128]{1,0:T(1,128)}', space=vmem, size = 0x12000, scoped, tag = 'internal scratch']
  %s0 = inlined_call_operand.hbm [shape: f32[2,8,32], index: 0, kind: input, shape index: {}]
  %s1 = inlined_call_operand.hbm [shape: f32[32,128], index: 1, kind: input, shape index: {}]
  %s2 = inlined_call_operand.vmem [shape: f32[2,128], index: 2, kind: input, shape index: {}]
  %s3 = inlined_call_operand.vmem [shape: f32[2,128], index: 3, kind: input, shape index: {}]
  %s4 = inlined_call_operand.hbm [shape: f32[2,8,128], index: 4, kind: output, shape index: {}]
  %s5 = sld [smem:[#allocation0]]
  $region57: #{tpu_custom_call.1} parent=0
    _
  %s7 = ssub.s32 1, %s5
  %s8 = scalar_select 0, %s7, %s5
  $region1: #{tpu_custom_call.1} parent=0
    #allocation2 [shape = 'u8[8192]{0}', space=vmem, size = 0x2000, scoped, tag = 'input window, operand 0']
    #allocation3 [shape = 's32[2]{0}', space=sflag, size = 0x8, scoped, tag = 'scoped memory for tpu_custom_call.1']
    #allocation4 [shape = 's32[2]{0}', space=sflag, size = 0x8, scoped, tag = 'scoped memory for tpu_custom_call.1']
    #allocation5 [shape = 'u8[16384]{0}', space=vmem, size = 0x4000, scoped, tag = 'input window, operand 1, single buffered']
    #allocation6 [shape = 's32[1]{0}', space=sflag, size = 0x4, scoped, tag = 'scoped memory for tpu_custom_call.1']
    #allocation7 [shape = 'u8[8192]{0}', space=vmem, size = 0x2000, scoped, tag = 'output window, operand 0']
    %9 = vsyncpa [#allocation3], 0
    %s10 = scalar_lea.sflag [#allocation3], 1
    %11 = vsyncpa %s10, 0
    %12 = vsyncpa [#allocation6], 0
    %13 = vsyncpa [#allocation4], 0
    %s14 = scalar_lea.sflag [#allocation4], 1
    %15 = vsyncpa %s14, 0
    loop: start=0, step=1, limit=4
    $region2: #{tpu_custom_call.1} parent=1 // loop_pre_header
      _
    $region3: #{tpu_custom_call.1} parent=1 // loop_header
      %s17 = sphi 0, %s21
      %p18 = scmp.ge.s32.totalorder %s17, 4
      %s24 = sphi 0, %s36
      %s25 = sphi 0, %s32
      %s26 = sphi 0, %s24
      %s27 = sphi 0, %s25
      %s28 = sphi 0, %s26
      %s29 = sphi 0, %s27
      %s41 = sphi 0, %s43
      %s44 = sphi 0, %s41
      %s45 = sphi 0, %s44
      %s61 = sphi 0, %s45
      %s65 = sphi 0, %s65
      %s67 = sphi 0, %s65
      %s68 = sphi 0, %s67
      %s82 = sphi 0, %s68
      %s86 = sphi 0, %s86
      %s88 = sphi 0, %s86
      %s89 = sphi 0, %s88
      %s103 = sphi 0, %s89
      %s107 = sphi 0, %s107
      %s109 = sphi 0, %s107
      %s110 = sphi 0, %s109
      %s124 = sphi 0, %s110
      %s132 = sphi 0, %s134
      %s135 = sphi 0, %s132
      %s136 = sphi 0, %s135
      %s152 = sphi 0, %s136
    $region4: #{tpu_custom_call.1} parent=1 // loop_header_branch
      %20 = sbr.rel (%p18) target = $region8
    $region5: #{tpu_custom_call.1} parent=1 // loop_body
      %s22 = ssub.s32 %s17, 1
      %s23 = ssub.s32 %s17, 2
      %s30 = sadd.s32 1, %s25
      %p31 = scmp.ge.s32.totalorder %s30, 1
      %s32 = scalar_select %p31, 0, %s30
      %s33 = sadd.s32 1, %s24
      %s34 = scalar_select %p31, %s33, %s24
      %p35 = scmp.ge.s32.totalorder %s34, 2
      %s36 = scalar_select %p35, 0, %s34
      %s37 = ssub.s32 %s24, %s36
      %s38 = ssub.s32 %s25, %s32
      %s39 = sor.u32 %s37, %s38
      %p40 = scmp.eq.s32.totalorder %s39, 0
      %s42 = sadd.s32 %s41, 1
      %s43 = scalar_select %p40, %s41, %s42
      %p46 = pneg %p40
      %p47 = scmp.eq.s32.totalorder %s17, 1
      %p48 = por %p46, %p47
      %p49 = scmp.ne.s32.totalorder %s41, %s44
      %p50 = scmp.eq.s32.totalorder %s17, 0
      %p51 = por %p49, %p50
      %p52 = scmp.ne.s32.totalorder %s41, %s44
      %p53 = scmp.eq.s32.totalorder %s22, 1
      %p54 = por %p52, %p53
      %p55 = scmp.ne.s32.totalorder %s44, %s45
      %p56 = scmp.eq.s32.totalorder %s22, 0
      %p57 = por %p55, %p56
      %p58 = scmp.ne.s32.totalorder %s44, %s45
      %p59 = scmp.eq.s32.totalorder %s23, 1
      %p60 = por %p58, %p59
      %p62 = scmp.ne.s32.totalorder %s45, %s61
      %p63 = scmp.eq.s32.totalorder %s23, 0
      %p64 = por %p62, %p63
      %s66 = sadd.s32 %s65, 1
      %p69 = scmp.eq.s32.totalorder %s17, 1
      %p70 = scmp.ne.s32.totalorder %s65, %s67
      %p71 = scmp.eq.s32.totalorder %s17, 0
      %p72 = por %p70, %p71
      %p73 = scmp.ne.s32.totalorder %s65, %s67
      %p74 = scmp.eq.s32.totalorder %s22, 1
      %p75 = por %p73, %p74
      %p76 = scmp.ne.s32.totalorder %s67, %s68
      %p77 = scmp.eq.s32.totalorder %s22, 0
      %p78 = por %p76, %p77
      %p79 = scmp.ne.s32.totalorder %s67, %s68
      %p80 = scmp.eq.s32.totalorder %s23, 1
      %p81 = por %p79, %p80
      %p83 = scmp.ne.s32.totalorder %s68, %s82
      %p84 = scmp.eq.s32.totalorder %s23, 0
      %p85 = por %p83, %p84
      %s87 = sadd.s32 %s86, 1
      %p90 = scmp.eq.s32.totalorder %s17, 1
      %p91 = scmp.ne.s32.totalorder %s86, %s88
      %p92 = scmp.eq.s32.totalorder %s17, 0
      %p93 = por %p91, %p92
      %p94 = scmp.ne.s32.totalorder %s86, %s88
      %p95 = scmp.eq.s32.totalorder %s22, 1
      %p96 = por %p94, %p95
      %p97 = scmp.ne.s32.totalorder %s88, %s89
      %p98 = scmp.eq.s32.totalorder %s22, 0
      %p99 = por %p97, %p98
      %p100 = scmp.ne.s32.totalorder %s88, %s89
      %p101 = scmp.eq.s32.totalorder %s23, 1
      %p102 = por %p100, %p101
      %p104 = scmp.ne.s32.totalorder %s89, %s103
      %p105 = scmp.eq.s32.totalorder %s23, 0
      %p106 = por %p104, %p105
      %s108 = sadd.s32 %s107, 1
      %p111 = scmp.eq.s32.totalorder %s17, 1
      %p112 = scmp.ne.s32.totalorder %s107, %s109
      %p113 = scmp.eq.s32.totalorder %s17, 0
      %p114 = por %p112, %p113
      %p115 = scmp.ne.s32.totalorder %s107, %s109
      %p116 = scmp.eq.s32.totalorder %s22, 1
      %p117 = por %p115, %p116
      %p118 = scmp.ne.s32.totalorder %s109, %s110
      %p119 = scmp.eq.s32.totalorder %s22, 0
      %p120 = por %p118, %p119
      %p121 = scmp.ne.s32.totalorder %s109, %s110
      %p122 = scmp.eq.s32.totalorder %s23, 1
      %p123 = por %p121, %p122
      %p125 = scmp.ne.s32.totalorder %s110, %s124
      %p126 = scmp.eq.s32.totalorder %s23, 0
      %p127 = por %p125, %p126
      %s128 = ssub.s32 %s24, %s36
      %s129 = ssub.s32 %s25, %s32
      %s130 = sor.u32 %s128, %s129
      %p131 = scmp.eq.s32.totalorder %s130, 0
      %s133 = sadd.s32 %s132, 1
      %s134 = scalar_select %p131, %s132, %s133
      %p137 = pneg %p131
      %p138 = scmp.eq.s32.totalorder %s17, 1
      %p139 = por %p137, %p138
      %p140 = scmp.ne.s32.totalorder %s132, %s135
      %p141 = scmp.eq.s32.totalorder %s17, 0
      %p142 = por %p140, %p141
      %p143 = scmp.ne.s32.totalorder %s132, %s135
      %p144 = scmp.eq.s32.totalorder %s22, 1
      %p145 = por %p143, %p144
      %p146 = scmp.ne.s32.totalorder %s135, %s136
      %p147 = scmp.eq.s32.totalorder %s22, 0
      %p148 = por %p146, %p147
      %p149 = scmp.ne.s32.totalorder %s135, %s136
      %p150 = scmp.eq.s32.totalorder %s23, 1
      %p151 = por %p149, %p150
      %p153 = scmp.ne.s32.totalorder %s136, %s152
      %p154 = scmp.eq.s32.totalorder %s23, 0
      %p155 = por %p153, %p154
      %p156 = scmp.le.s32.totalorder 1, %s17
      %p157 = scmp.lt.s32.totalorder %s17, 3
      %p158 = pnand %p156, %p157
      %p159 = pneg %p158
      // Predicated region
      $region9: #{tpu_custom_call.1} parent=5 // pred_check
        _
      $region10: #{tpu_custom_call.1} parent=5 // pred_check_branch
        %161 = sbr.rel (%p158) target = $region12
      $region11: #{tpu_custom_call.1} parent=5 // pred_region
        %s162 = ssub.s32 %s17, 1
        // Predicated region
        $region13: #{tpu_custom_call.1} parent=11 // pred_check
          %p163 = pneg %p78
        $region14: #{tpu_custom_call.1} parent=11 // pred_check_branch
          %165 = sbr.rel (%p163) target = $region16
        $region15: #{tpu_custom_call.1} parent=11 // pred_region
          %s167 = ssub.s32 512, 512
          %168 = vsyncadd [#allocation6], %s167
          %s169 = sshll.u32 [#allocation5], 4
          %s170 = int_to_ptr.vmem [resolvable:$true] %s169
          %175 = dma.hbm_to_vmem [thread:$0]  %s1, 512, %s170, [#allocation6], 128, 128, 8
        $region16: #{tpu_custom_call.1} parent=11 // pred_fallthru
          _
        // Predicated region
        $region17: #{tpu_custom_call.1} parent=11 // pred_check
          %p176 = pneg %p99
        $region18: #{tpu_custom_call.1} parent=11 // pred_check_branch
          %178 = sbr.rel (%p176) target = $region20
        $region19: #{tpu_custom_call.1} parent=11 // pred_region
          _
        $region20: #{tpu_custom_call.1} parent=11 // pred_fallthru
          _
        // Predicated region
        $region21: #{tpu_custom_call.1} parent=11 // pred_check
          %p179 = pneg %p120
        $region22: #{tpu_custom_call.1} parent=11 // pred_check_branch
          %181 = sbr.rel (%p179) target = $region24
        $region23: #{tpu_custom_call.1} parent=11 // pred_region
          _
        $region24: #{tpu_custom_call.1} parent=11 // pred_fallthru
          _
      $region12: #{tpu_custom_call.1} parent=5 // pred_fallthru
        _
      %p182 = scmp.lt.s32.totalorder %s17, 2
      // Predicated region
      $region25: #{tpu_custom_call.1} parent=5 // pred_check
        %p183 = pneg %p182
      $region26: #{tpu_custom_call.1} parent=5 // pred_check_branch
        %185 = sbr.rel (%p183) target = $region28
      $region27: #{tpu_custom_call.1} parent=5 // pred_region
        // Predicated region
        $region29: #{tpu_custom_call.1} parent=27 // pred_check
          %p186 = pneg %p51
        $region30: #{tpu_custom_call.1} parent=27 // pred_check_branch
          %188 = sbr.rel (%p186) target = $region32
        $region31: #{tpu_custom_call.1} parent=27 // pred_region
          %s189 = sand.u32 %s41, 1
          %s190 = scalar_lea.sflag [#allocation3], %s189
          %s191 = sand.u32 %s41, 1
          %s192 = smul.addr %s191, 8
          %s193 = scalar_lea.vmem [#allocation2], %s192
          %s195 = ssub.s32 128, 128
          %196 = vsyncadd %s190, %s195
          %s197 = sadd.s32 %s25, %s24
          %s198 = smul.addr %s197, 128
          %s199 = scalar_lea.hbm %s0, %s198
          %s201 = sshll.u32 %s193, 4
          %s202 = int_to_ptr.vmem [resolvable:$true] %s201
          %204 = dma.hbm_to_vmem [thread:$0]  %s199, 128, %s202, %s190
        $region32: #{tpu_custom_call.1} parent=27 // pred_fallthru
          _
      $region28: #{tpu_custom_call.1} parent=5 // pred_fallthru
        _
      %p205 = scmp.le.s32.totalorder 1, %s17
      %p206 = scmp.lt.s32.totalorder %s17, 3
      %p207 = pnand %p205, %p206
      %p208 = pneg %p207
      // Predicated region
      $region33: #{tpu_custom_call.1} parent=5 // pred_check
        _
      $region34: #{tpu_custom_call.1} parent=5 // pred_check_branch
        %210 = sbr.rel (%p207) target = $region36
      $region35: #{tpu_custom_call.1} parent=5 // pred_region
        %s211 = ssub.s32 %s17, 1
        %s212 = sand.u32 %s44, 1
        %s213 = scalar_lea.sflag [#allocation3], %s212
        %s214 = sand.u32 %s44, 1
        %s215 = smul.addr %s214, 8
        %s216 = scalar_lea.vmem [#allocation2], %s215
        // Predicated region
        $region37: #{tpu_custom_call.1} parent=35 // pred_check
          %p217 = pneg %p57
        $region38: #{tpu_custom_call.1} parent=35 // pred_check_branch
          %219 = sbr.rel (%p217) target = $region40
        $region39: #{tpu_custom_call.1} parent=35 // pred_region
          %220 = dma.done %s213, 128
        $region40: #{tpu_custom_call.1} parent=35 // pred_fallthru
          _
        // Predicated region
        $region41: #{tpu_custom_call.1} parent=35 // pred_check
          %p221 = pneg %p78
        $region42: #{tpu_custom_call.1} parent=35 // pred_check_branch
          %223 = sbr.rel (%p221) target = $region44
        $region43: #{tpu_custom_call.1} parent=35 // pred_region
          %224 = dma.done [#allocation6], 512
        $region44: #{tpu_custom_call.1} parent=35 // pred_fallthru
          _
        %s225 = sand.u32 %s44, 1
        %s226 = scalar_lea.sflag [#allocation3], %s225
        %s227 = sand.u32 %s44, 1
        %s228 = smul.addr %s227, 8
        %s229 = scalar_lea.vmem [#allocation2], %s228
        %p230 = pneg %p57
        %p231 = pneg %p54
        %p232 = pneg %p78
        %p233 = pneg %p75
        %p234 = pneg %p99
        %p235 = pneg %p96
        %p236 = pneg %p120
        %p237 = pneg %p117
        %p238 = pneg %p148
        %p239 = pneg %p145
        %s240 = sand.u32 %s135, 1
        %s241 = scalar_lea.sflag [#allocation4], %s240
        %s242 = sand.u32 %s135, 1
        %s243 = smul.addr %s242, 8
        %s244 = scalar_lea.vmem [#allocation7], %s243
        %v245 = vld [vmem:[%s216] sm:$0xff]
        %v246 = vld [vmem:[#allocation5] sm:$0xff]
        %v247 = vld [vmem:[#allocation5 + $0x8] sm:$0xff]
        %v248 = vld [vmem:[#allocation5 + $0x10] sm:$0xff]
        %v249 = vld [vmem:[#allocation5 + $0x18] sm:$0xff]
        %vm250 = vcmask 261120
        %v252 = vsel %vm250, %v245, 0
        %254 = vmatprep.subr.mxu0 0.0
        %255 = vmatpush1.msra.mxu0 %v246
        %256 = vmatprep.subr.mxu0 0.0
        %257 = vmatpush1.msra.mxu0 %v247
        %258 = vmatprep.subr.mxu0 0.0
        %259 = vmatpush1.msra.mxu0 %v248
        %260 = vmatprep.subr.mxu0 0.0
        %261 = vmatpush1.msra.mxu0 %v249
        %262 = vmatprep.subr.mxu0 0.0
        %263 = vmatpush1.msra.mxu0 0.0
        %264 = vmatprep.subr.mxu0 0.0
        %265 = vmatpush1.msra.mxu0 0.0
        %266 = vmatprep.subr.mxu0 0.0
        %267 = vmatpush1.msra.mxu0 0.0
        %268 = vmatprep.subr.mxu0 0.0
        %269 = vmatpush1.msra.mxu0 0.0
        %270 = vmatprep.subr.mxu0 0.0
        %271 = vmatpush1.msra.mxu0 0.0
        %272 = vmatprep.subr.mxu0 0.0
        %273 = vmatpush1.msra.mxu0 0.0
        %274 = vmatprep.subr.mxu0 0.0
        %275 = vmatpush1.msra.mxu0 0.0
        %276 = vmatprep.subr.mxu0 0.0
        %277 = vmatpush1.msra.mxu0 0.0
        %278 = vmatprep.subr.mxu0 0.0
        %279 = vmatpush1.msra.mxu0 0.0
        %280 = vmatprep.subr.mxu0 0.0
        %281 = vmatpush1.msra.mxu0 0.0
        %282 = vmatprep.subr.mxu0 0.0
        %283 = vmatpush1.msra.mxu0 0.0
        %284 = vmatprep.subr.mxu0 0.0
        %285 = vmatpush1.msra.mxu0 0.0
        %286 = vmatprep.subr.mxu0 0.0
        %287 = vmatpush1.msra.mxu0 0.0
        %288 = vmatprep.subr.mxu0 0.0
        %289 = vmatpush1.msra.mxu0 0.0
        %290 = vmatprep.subr.mxu0 0.0
        %291 = vmatpush1.msra.mxu0 0.0
        %292 = vmatprep.subr.mxu0 0.0
        %293 = vmatpush1.msra.mxu0 0.0
        %294 = vmatprep.subr.mxu0 0.0
        %295 = vmatpush1.msra.mxu0 0.0
        %296 = vmatprep.subr.mxu0 0.0
        %297 = vmatpush1.msra.mxu0 0.0
        %298 = vmatprep.subr.mxu0 0.0
        %299 = vmatpush1.msra.mxu0 0.0
        %300 = vmatprep.subr.mxu0 0.0
        %301 = vmatpush1.msra.mxu0 0.0
        %302 = vmatprep.subr.mxu0 0.0
        %303 = vmatpush1.msra.mxu0 0.0
        %304 = vmatprep.subr.mxu0 0.0
        %305 = vmatpush1.msra.mxu0 0.0
        %306 = vmatprep.subr.mxu0 0.0
        %307 = vmatpush1.msra.mxu0 0.0
        %308 = vmatprep.subr.mxu0 0.0
        %309 = vmatpush1.msra.mxu0 0.0
        %310 = vmatprep.subr.mxu0 0.0
        %311 = vmatpush1.msra.mxu0 0.0
        %312 = vmatprep.subr.mxu0 0.0
        %313 = vmatpush1.msra.mxu0 0.0
        %314 = vmatprep.subr.mxu0 0.0
        %315 = vmatpush1.msra.mxu0 0.0
        %316 = vmatprep.subr.mxu0 0.0
        %317 = vmatpush1.msra.mxu0 0.0
        %318 = vmatprep.mubr.f32.mxu0 0.0
        %319 = vmatmul.mubr.f32.gmra.mrb[0].mxu0 %v252
        %v320 = vpop.f32.mrb[0].mxu0
        %v321 = vadd.f32 0.0, %v320
        %v322 = vpop.f32.mrb[0].mxu0
        %323 = vdwg.mxu0
        %s324 = scalar_lea.vmem %s2, %s26
        %v325 = vld [vmem:[%s324] sm:$0x1]
        %s326 = scalar_lea.vmem %s3, %s26
        %v327 = vld [vmem:[%s326] sm:$0x1]
        %v328 = vlaneseq
        %v329 = vshrl.u32 %v328, 7
        %v330 = vsub.s32 0, %v329
        %v331 = vrot.slane %v325, %v330
        %v332 = vmul.f32 %v331, %v321
        %v333 = vlaneseq
        %v334 = vshrl.u32 %v333, 7
        %v335 = vsub.s32 0, %v334
        %v336 = vrot.slane %v327, %v335
        %v337 = vadd.f32 %v332, %v336
        %v338 = vand.u32 2147483647, %v337
        %vm339 = vcmp.le.f32.partialorder %v338, 0.7853982
        %vm340 = vcmp.lt.s32.totalorder %v337, 0
        %v341 = vand.u32 %v337, 2139095040
        %v342 = vshrl.u32 %v341, 23
        %v343 = vsub.s32 %v342, 127
        %v344 = vand.u32 2147483647, %v337
        %v345 = vand.u32 %v344, 8388607
        %v346 = vor.u32 %v345, 8388608
        %v347 = vsub.s32 0, %v346
        %v348 = vadd.s32 %v343, 1
        %vm349 = vcmp.gt.s32.totalorder %v348, 0
        %v350 = vsel %vm349, %v348, 0
        %v351 = vshrl.u32 %v350, 5
        %v352 = vand.u32 %v350, 31
        %v353 = vsub.s32 32, %v352
        %v354 = vshrl.u32 683565275, %v353
        %v355 = vshll.u32 683565275, %v352
        %v356 = vshrl.u32 2475754826, %v353
        %v357 = vor.u32 %v355, %v356
        %v358 = vshll.u32 2475754826, %v352
        %v359 = vshrl.u32 2131351028, %v353
        %v360 = vor.u32 %v358, %v359
        %v361 = vshll.u32 2131351028, %v352
        %v362 = vshrl.u32 2102212464, %v353
        %v363 = vor.u32 %v361, %v362
        %v364 = vshll.u32 2102212464, %v352
        %v365 = vshrl.u32 920167782, %v353
        %v366 = vor.u32 %v364, %v365
        %v367 = vshll.u32 920167782, %v352
        %v368 = vshrl.u32 1326507024, %v353
        %v369 = vor.u32 %v367, %v368
        %vm370 = vcmp.lt.s32.totalorder %v351, 1
        %vm371 = vcmp.lt.s32.totalorder %v351, 2
        %vm372 = vcmp.lt.s32.totalorder %v351, 3
        %vm373 = vcmp.lt.s32.totalorder %v351, 4
        %v374 = vsel %vm370, %v354, %v357
        %v375 = vsel %vm373, %v363, 2102212464
        %v376 = vsel %vm372, %v360, %v375
        %v377 = vsel %vm371, %v374, %v376
        %v378 = vsel %vm370, %v357, %v360
        %v379 = vsel %vm373, %v366, 920167782
        %v380 = vsel %vm372, %v363, %v379
        %v381 = vsel %vm371, %v378, %v380
        %v382 = vsel %vm370, %v360, %v363
        %v383 = vsel %vm373, %v369, 1326507024
        %v384 = vsel %vm372, %v366, %v383
        %v385 = vsel %vm371, %v382, %v384
        %v386 = vshll.u32 %v346, 8
        %v387 = vmul.u32.u64.compose %v386, %v385
        %v388 = vextract.low.u32 %v387
        %v389 = vextract.high.u32 %v387
        %v390 = vmul.u32.u64.compose %v386, %v381
        %v391 = vextract.low.u32 %v390
        %v392 = vextract.high.u32 %v390
        %v393 = vmul.u32 %v386, %v377
        %v394 = vadd.s32 %v389, %v391
        %vm395 = vc.u32 %v389, %v391
        %v396 = vadd.s32 %v392, 1
        %v397 = vsel %vm395, %v396, %v392
        %v398 = vadd.s32 %v393, %v397
        %v399 = vadd.s32 %v398, 536870912
        %v400 = vshrl.u32 %v399, 30
        %v401 = vshll.u32 %v400, 30
        %v402 = vsub.s32 %v398, %v401
        %vm403 = vcmp.lt.s32.totalorder %v402, 0
        %v404 = vsub.s32 0, %v402
        %v405 = vsel %vm403, %v404, %v402
        %v406 = vclz %v405
        %v407 = vsub.s32 %v406, 2
        %vm408 = vcmp.gt.s32.totalorder 0, %v407
        %v409 = vsel %vm408, 0, %v407
        %v410 = vsub.s32 32, %v409
        %v411 = vshll.u32 %v402, %v409
        %v412 = vshrl.u32 %v394, %v410
        %v413 = vor.u32 %v411, %v412
        %v414 = vsub.s32 4294967266, %v409
        %v415 = vadd.s32 %v414, 127
        %v416 = vshll.u32 %v415, 23
        %v417 = vor.u32 4788187, %v416
        %v418 = vand.u32 2147483647, %v417
        %v420 = vcvt.s32.f32 %v413
        %v421 = vmul.f32 %v420, %v418
        %v422 = vxor.u32 %v421, 2147483648
        %v423 = vsel %vm340, %v422, %v421
        %v424 = vsub.s32 4, %v400
        %v425 = vsel %vm340, %v424, %v400
        %v426 = vsel %vm339, %v337, %v423
        %v427 = vsel %vm339, 0, %v425
        %v428 = vcosq.f32.pop %v426
        %v429 = vsinq.f32.pop %v426
        %vm430 = vweird.f32 %v337
        %v431 = vadd.s32 %v427, 3
        %v432 = vand.u32 %v431, 3
        %vm433 = vcmp.lt.s32.totalorder %v432, 2
        %vm434 = vcmp.eq.s32.totalorder %v432, 0
        %v435 = vxor.u32 %v429, 2147483648
        %v436 = vsel %vm434, %v428, %v435
        %vm437 = vcmp.eq.s32.totalorder %v432, 2
        %v438 = vxor.u32 %v428, 2147483648
        %v439 = vsel %vm437, %v438, %v429
        %v440 = vsel %vm433, %v436, %v439
        %v441 = vsel %vm430, nan, %v440
        %442 = vst [vmem:[%s244] sm:$0xff] %v441
        %s443 = sand.u32 %s135, 1
        %s444 = scalar_lea.sflag [#allocation4], %s443
        %s445 = sand.u32 %s135, 1
        %s446 = smul.addr %s445, 8
        %s447 = scalar_lea.vmem [#allocation7], %s446
        // Predicated region
        $region45: #{tpu_custom_call.1} parent=35 // pred_check
          %p448 = pneg %p145
        $region46: #{tpu_custom_call.1} parent=35 // pred_check_branch
          %450 = sbr.rel (%p448) target = $region48
        $region47: #{tpu_custom_call.1} parent=35 // pred_region
          %s452 = ssub.s32 128, 128
          %453 = vsyncadd %s444, %s452
          %s454 = sadd.s32 %s27, %s26
          %s455 = smul.addr %s454, 128
          %s456 = scalar_lea.hbm %s4, %s455
          %s458 = sshll.u32 %s447, 4
          %s459 = int_to_ptr.vmem [resolvable:$true] %s458
          %461 = dma.vmem_to_hbm [thread:$0]  %s459, 128, %s456, %s444
        $region48: #{tpu_custom_call.1} parent=35 // pred_fallthru
          _
      $region36: #{tpu_custom_call.1} parent=5 // pred_fallthru
        _
      %p462 = scmp.le.s32.totalorder 2, %s17
      // Predicated region
      $region49: #{tpu_custom_call.1} parent=5 // pred_check
        %p463 = pneg %p462
      $region50: #{tpu_custom_call.1} parent=5 // pred_check_branch
        %465 = sbr.rel (%p463) target = $region52
      $region51: #{tpu_custom_call.1} parent=5 // pred_region
        %s466 = ssub.s32 %s17, 2
        // Predicated region
        $region53: #{tpu_custom_call.1} parent=51 // pred_check
          %p467 = pneg %p151
        $region54: #{tpu_custom_call.1} parent=51 // pred_check_branch
          %469 = sbr.rel (%p467) target = $region56
        $region55: #{tpu_custom_call.1} parent=51 // pred_region
          %s470 = sand.u32 %s136, 1
          %s471 = scalar_lea.sflag [#allocation4], %s470
          %s472 = sand.u32 %s136, 1
          %s473 = smul.addr %s472, 8
          %s474 = scalar_lea.vmem [#allocation7], %s473
          %475 = dma.done %s471, 128
        $region56: #{tpu_custom_call.1} parent=51 // pred_fallthru
          _
      $region52: #{tpu_custom_call.1} parent=5 // pred_fallthru
        _
    $region6: #{tpu_custom_call.1} parent=1 // loop_footer
      %s21 = sadd.s32 1, %s17
    $region7: #{tpu_custom_call.1} parent=1 // loop_footer_branch
      %16 = sbr.rel target = $region3
    $region8: #{tpu_custom_call.1} parent=1 // loop_exit
      _
    %476 = vsyncpa [#allocation3], 1
    %s477 = scalar_lea.sflag [#allocation3], 1
    %478 = vsyncpa %s477, 1
    %479 = vsyncpa [#allocation6], 1
    %480 = vsyncpa [#allocation4], 1
    %s481 = scalar_lea.sflag [#allocation4], 1
    %482 = vsyncpa %s481, 1

</llo_original>
